<compile_context>
chip_gen: v6e
topology: v6e:2x2x1
jax: 0.10.0
libtpu: 0.0.40
codegen_flags: <defaults>
</compile_context>

<pallas_src>
import functools

import jax
import jax.numpy as jnp
from jax.experimental import pallas as pl
from jax.experimental.pallas import tpu as pltpu

LANES = 128               # lane-dense width (multiple of 128 -> unmasked vst)
MAX_TILE_ROWS = 4096      # 4096 x 128 f32 = 2 MiB per block
SPLIT_THRESHOLD_ROWS = 256  # above this, force >= 2 grid steps (v7x megacore)
TINY_INPUT_ELEMS = 16384  # below this, skip pallas_call (launch overhead dominates)


def _round_up(x: int, m: int) -> int:
    return ((x + m - 1) // m) * m


def _sublane_multiple(dtype) -> int:
    # 8 for 4-byte, 16 for 2-byte, 32 for 1-byte dtypes.
    return max(8, 32 // jnp.dtype(dtype).itemsize)


def _compute_dtype_for(dtype):
    """bf16 compute only where the VPU/EUP support it (v6e / v7x); else f32."""
    if jnp.dtype(dtype) != jnp.dtype(jnp.bfloat16):
        return jnp.float32
    try:
        kind = jax.devices()[0].device_kind.lower()
    except Exception:
        return jnp.float32
    return jnp.bfloat16 if ("v6" in kind or "v7" in kind) else jnp.float32


# ------------------------------ Pallas kernel --------------------------------
def _shifted_softplus_kernel(x_ref, o_ref, *, beta: float, threshold: float,
                             compute_dtype):
    x = x_ref[...].astype(compute_dtype)
    z = x - jnp.asarray(1.0, compute_dtype)       # the "shift"
    bz = z * beta if beta != 1.0 else z           # compile-time specialization
    # Stable softplus branch: clamp the exp argument so the non-selected branch
    # of the where never overflows (both branches are evaluated).
    sp = jnp.log1p(jnp.exp(jnp.minimum(bz, threshold)))
    if beta != 1.0:
        sp = sp * (1.0 / beta)
    o_ref[...] = jnp.where(bz > threshold, z, sp).astype(o_ref.dtype)


# --------------------------------- wrapper ------------------------------------
def shifted_softplus(x: jax.Array, beta: float = 1.0, threshold: float = 20.0,
                     *, max_tile_rows: int = MAX_TILE_ROWS,
                     min_kernel_elems: int = TINY_INPUT_ELEMS) -> jax.Array:
    """Pallas equivalent of ShiftedSoftplus(beta, threshold).forward(x)."""
    orig_shape = x.shape
    n = x.size
    beta = float(beta)
    threshold = float(threshold)
    if n == 0:
        return x
    if n < min_kernel_elems:
        # Tiny input: fixed kernel-launch overhead dominates; plain XLA is faster.
        return _ref_shifted_softplus(x, beta, threshold).astype(x.dtype)

    sublane = _sublane_multiple(x.dtype)
    rows_needed = pl.cdiv(n, LANES)
    rows = _round_up(rows_needed, sublane)     # minimal padding (< sublane*128 elems)
    padded = rows * LANES

    flat = x.reshape(-1)
    if padded != n:
        flat = jnp.pad(flat, (0, padded - n))
    x2d = flat.reshape(rows, LANES)

    # Tile selection: biggest tile up to MAX_TILE_ROWS, but force >= 2 grid steps
    # for medium/large inputs so the "parallel" axis shards across v7x's 2 TCs.
    if rows > SPLIT_THRESHOLD_ROWS:
        tile_rows = min(max_tile_rows, _round_up(pl.cdiv(rows, 2), sublane))
    else:
        tile_rows = rows
    grid = (pl.cdiv(rows, tile_rows),)   # ragged last block handled by Pallas masking

    compute_dtype = _compute_dtype_for(x.dtype)
    kernel = functools.partial(_shifted_softplus_kernel, beta=beta,
                               threshold=threshold, compute_dtype=compute_dtype)

    itemsize = jnp.dtype(x.dtype).itemsize
    out2d = pl.pallas_call(
        kernel,
        out_shape=jax.ShapeDtypeStruct((rows, LANES), x.dtype),
        grid_spec=pltpu.PrefetchScalarGridSpec(
            num_scalar_prefetch=0,
            grid=grid,
            in_specs=[pl.BlockSpec((tile_rows, LANES), lambda i: (i, 0))],
            out_specs=pl.BlockSpec((tile_rows, LANES), lambda i: (i, 0)),
        ),
        compiler_params=pltpu.CompilerParams(
            dimension_semantics=("parallel",),   # megacore sharding on v7x
        ),
        cost_estimate=pl.CostEstimate(
            flops=5 * n, transcendentals=2 * n, bytes_accessed=2 * n * itemsize),
    )(x2d)

    out_flat = out2d.reshape(-1)
    if padded != n:
        out_flat = out_flat[:n]
    return out_flat.reshape(orig_shape)


# -------------------------------- reference -----------------------------------
def _ref_shifted_softplus(x, beta: float, threshold: float):
    xf = x.astype(jnp.float32)
    z = xf - 1.0
    bz = beta * z
    sp = jnp.log1p(jnp.exp(jnp.minimum(bz, threshold))) / beta
    return jnp.where(bz > threshold, z, sp)


# ---------------------------------- main ---------------------------------------
if __name__ == "__main__":
    key = jax.random.PRNGKey(0)
    k1, k2, k3 = jax.random.split(key, 3)

    # 1) Module-shaped small input; force the Pallas path (the default wrapper
    #    would route this tiny array to the XLA fast path).
    x = 12.0 * jax.random.normal(k1, (2, 4, 16, 16), jnp.float32)
    out = shifted_softplus(x, min_kernel_elems=0)
    jax.block_until_ready(out)
    ref = _ref_shifted_softplus(x, 1.0, 20.0)
    assert out.shape == x.shape and out.dtype == x.dtype
    assert jnp.allclose(out, ref, atol=1e-5, rtol=1e-5)

    # 2) Larger, non-lane-aligned 1D input: exercises the minimal-padding path,
    #    the ragged last block, the >= 2-step grid, and the beta != 1 path.
    y = 8.0 * jax.random.normal(k2, (300001,), jnp.float32)
    out2 = shifted_softplus(y, beta=2.0, threshold=10.0)
    jax.block_until_ready(out2)
    ref2 = _ref_shifted_softplus(y, 2.0, 10.0)
    assert out2.shape == y.shape
    assert jnp.allclose(out2, ref2, atol=1e-5, rtol=1e-5)

    # 3) bf16 input (bf16 compute on v6e/v7x, f32 compute on v5e).
    z = (6.0 * jax.random.normal(k3, (64, 512), jnp.float32)).astype(jnp.bfloat16)
    out3 = shifted_softplus(z, min_kernel_elems=0)
    jax.block_until_ready(out3)
    ref3 = _ref_shifted_softplus(z, 1.0, 20.0)
    assert out3.shape == z.shape and out3.dtype == jnp.bfloat16
    assert jnp.allclose(out3.astype(jnp.float32), ref3, atol=0.1, rtol=0.05)

    print("KERNEL_OK")
</pallas_src>

<mosaic_0001>
module attributes {stable_mosaic.version = 11 : i64} {
  func.func @_shifted_softplus_kernel(%arg0: i32, %arg1: memref<16x128xf32, #tpu.memory_space<vmem>>, %arg2: memref<16x128xf32, #tpu.memory_space<vmem>>) attributes {dimension_semantics = [#tpu.dimension_semantics<parallel>], iteration_bounds = array<i64: 1>, scalar_prefetch = 0 : i64, scratch_operands = 0 : i64, tpu.core_type = #tpu.core_type<tc>, window_params = [{transform_indices = @transform_0, window_bounds = array<i64: 16, 128>}, {transform_indices = @transform_1, window_bounds = array<i64: 16, 128>}]} {
    %c0 = arith.constant 0 : index
    %c0_0 = arith.constant 0 : index
    %0 = vector.load %arg1[%c0, %c0_0] : memref<16x128xf32, #tpu.memory_space<vmem>>, vector<16x128xf32>
    %cst = arith.constant 1.000000e+00 : f32
    %1 = vector.broadcast %cst : f32 to vector<16x128xf32>
    %2 = arith.subf %0, %1 : vector<16x128xf32>
    %cst_1 = arith.constant 2.000000e+01 : f32
    %3 = vector.broadcast %cst_1 : f32 to vector<16x128xf32>
    %4 = arith.minimumf %2, %3 : vector<16x128xf32>
    %5 = math.exp %4 : vector<16x128xf32>
    %6 = math.log1p %5 : vector<16x128xf32>
    %cst_2 = arith.constant 2.000000e+01 : f32
    %7 = vector.broadcast %cst_2 : f32 to vector<16x128xf32>
    %8 = arith.cmpf ogt, %2, %7 : vector<16x128xf32>
    %9 = arith.select %8, %2, %6 : vector<16x128xi1>, vector<16x128xf32>
    %c0_3 = arith.constant 0 : index
    %c0_4 = arith.constant 0 : index
    %10 = vector.load %arg2[%c0_3, %c0_4] : memref<16x128xf32, #tpu.memory_space<vmem>>, vector<16x128xf32>
    tpu.vector_store %arg2[%c0_3, %c0_4], %9 {strides = array<i32>} : memref<16x128xf32, #tpu.memory_space<vmem>>, vector<16x128xf32>,
    return
  }
  func.func @transform_0(%arg0: i32) -> (i32, i32) {
    %c0_i32 = arith.constant 0 : i32
    %c0_i32_0 = arith.constant 0 : i32
    return %arg0, %c0_i32 : i32, i32
  }
  func.func @transform_1(%arg0: i32) -> (i32, i32) {
    %c0_i32 = arith.constant 0 : i32
    %c0_i32_0 = arith.constant 0 : i32
    return %arg0, %c0_i32 : i32, i32
  }
}

</mosaic_0001>

<llo_original>
// kernel: tpu_custom_call.1
$region0: #{tpu_custom_call.1}
  #allocation0 [shape = 'u32[]', space=smem, size = 0x4, offset = 0x4, fixed_abs, tag = 'smem constant byte address 0x4 - core index']
  #allocation1 [shape = 'u32[144,128]{1,0:T(1,128)}', space=vmem, size = 0x12000, scoped, tag = 'internal scratch']
  %s0 = inlined_call_operand.hbm [shape: f32[16,128], index: 0, kind: input, shape index: {}]
  %s1 = inlined_call_operand.hbm [shape: f32[16,128], index: 1, kind: output, shape index: {}]
  %s2 = sld [smem:[#allocation0]]
  $region18: #{tpu_custom_call.1} parent=0
    _
  %s4 = ssub.s32 1, %s2
  %s5 = scalar_select 0, %s4, %s2
  $region1: #{tpu_custom_call.1} parent=0
    #allocation2 [shape = 'u8[8192]{0}', space=vmem, size = 0x2000, scoped, tag = 'input window, operand 0, single buffered']
    #allocation3 [shape = 's32[1]{0}', space=sflag, size = 0x4, scoped, tag = 'scoped memory for tpu_custom_call.1']
    #allocation4 [shape = 's32[1]{0}', space=sflag, size = 0x4, scoped, tag = 'scoped memory for tpu_custom_call.1']
    #allocation5 [shape = 'u8[8192]{0}', space=vmem, size = 0x2000, scoped, tag = 'output window, operand 0, single buffered']
    %6 = vsyncpa [#allocation3], 0
    %7 = vsyncpa [#allocation4], 0
    // Predicated region
    $region2: #{tpu_custom_call.1} parent=1 // pred_check
      _
    $region3: #{tpu_custom_call.1} parent=1 // pred_check_branch
      %9 = sbr.rel (0) target = $region5
    $region4: #{tpu_custom_call.1} parent=1 // pred_region
      %s11 = ssub.s32 256, 256
      %12 = vsyncadd [#allocation3], %s11
      %s13 = sshll.u32 [#allocation2], 4
      %s14 = int_to_ptr.vmem [resolvable:$true] %s13
      %19 = dma.hbm_to_vmem [thread:$0]  %s0, 256, %s14, [#allocation3], 128, 128, 8
    $region5: #{tpu_custom_call.1} parent=1 // pred_fallthru
      _
    // Predicated region
    $region6: #{tpu_custom_call.1} parent=1 // pred_check
      _
    $region7: #{tpu_custom_call.1} parent=1 // pred_check_branch
      %21 = sbr.rel (0) target = $region9
    $region8: #{tpu_custom_call.1} parent=1 // pred_region
      %22 = dma.done [#allocation3], 256
    $region9: #{tpu_custom_call.1} parent=1 // pred_fallthru
      _
    %v23 = vld [vmem:[#allocation2] sm:$0xff]
    %v24 = vld [vmem:[#allocation2 + $0x8] sm:$0xff]
    %v25 = vsub.f32 %v23, 1.0
    %v26 = vsub.f32 %v24, 1.0
    %v27 = vmin.f32 %v25, 20.0
    %v28 = vmin.f32 %v26, 20.0
    %v29 = vmul.f32 %v27, 1.442695
    %v30 = vpow.pop %v29
    %v31 = vmul.f32 %v28, 1.442695
    %v32 = vpow.pop %v31
    %v33 = vadd.f32 %v30, 1.0
    %v34 = vlog2.pop %v33
    %v35 = vmul.f32 %v34, 0.6931472
    %v36 = vmul.f32 -0.5, %v30
    %v37 = vadd.f32 %v36, 1.0
    %v38 = vmul.f32 %v37, %v30
    %v39 = vand.u32 2147483647, %v30
    %vm40 = vcmp.lt.f32.partialorder %v39, 0.0004427343
    %v41 = vsel %vm40, %v38, %v35
    %v42 = vadd.f32 %v32, 1.0
    %v43 = vlog2.pop %v42
    %v44 = vmul.f32 %v43, 0.6931472
    %v45 = vmul.f32 -0.5, %v32
    %v46 = vadd.f32 %v45, 1.0
    %v47 = vmul.f32 %v46, %v32
    %v48 = vand.u32 2147483647, %v32
    %vm49 = vcmp.lt.f32.partialorder %v48, 0.0004427343
    %v50 = vsel %vm49, %v47, %v44
    %vm51 = vcmp.gt.f32.partialorder %v25, 20.0
    %vm52 = vcmp.gt.f32.partialorder %v26, 20.0
    %v53 = vsel %vm51, %v25, %v41
    %v54 = vsel %vm52, %v26, %v50
    %55 = vst [vmem:[#allocation5] sm:$0xff] %v53
    %56 = vst [vmem:[#allocation5 + $0x8] sm:$0xff] %v54
    // Predicated region
    $region10: #{tpu_custom_call.1} parent=1 // pred_check
      _
    $region11: #{tpu_custom_call.1} parent=1 // pred_check_branch
      %58 = sbr.rel (0) target = $region13
    $region12: #{tpu_custom_call.1} parent=1 // pred_region
      %s60 = ssub.s32 256, 256
      %61 = vsyncadd [#allocation4], %s60
      %s62 = sshll.u32 [#allocation5], 4
      %s63 = int_to_ptr.vmem [resolvable:$true] %s62
      %68 = dma.vmem_to_hbm [thread:$0]  %s63, 256, %s1, [#allocation4], 128, 128, 8
    $region13: #{tpu_custom_call.1} parent=1 // pred_fallthru
      _
    // Predicated region
    $region14: #{tpu_custom_call.1} parent=1 // pred_check
      _
    $region15: #{tpu_custom_call.1} parent=1 // pred_check_branch
      %70 = sbr.rel (0) target = $region17
    $region16: #{tpu_custom_call.1} parent=1 // pred_region
      %71 = dma.done [#allocation4], 256
    $region17: #{tpu_custom_call.1} parent=1 // pred_fallthru
      _
    %72 = vsyncpa [#allocation3], 1
    %73 = vsyncpa [#allocation4], 1

</llo_original>
